<compile_context>
chip_gen: v6e
topology: v6e:2x2x1
jax: 0.10.0
libtpu: 0.0.40
codegen_flags: <defaults>
</compile_context>

<pallas_src>
import jax
import jax.numpy as jnp
from jax.experimental import pallas as pl
from jax.experimental.pallas import tpu as pltpu


def _round_up(x, m):
    return (x + m - 1) // m * m


# ---------------------------------------------------------------------------
# Fused Pallas kernel: 1x1 conv + bias + channel softmax (one HBM pass)
# ---------------------------------------------------------------------------

def _make_boundary_kernel(c_in, c_out, emit_logits):
    def kernel(w_ref, b_ref, x_ref, *out_refs):
        # w_ref: (Cout*Cin,) SMEM   b_ref: (Cout,) SMEM
        # x_ref: (nb, Cin, t) VMEM  out refs: (nb, Cout, t) VMEM
        if emit_logits:
            logit_ref, prob_ref = out_refs
        else:
            (prob_ref,) = out_refs

        # 1x1 conv unrolled as VPU broadcast-MACs, weights/bias as SMEM scalars.
        # Bias folded into the first MAC; each input slab is loaded exactly once
        # via a static ref view (no full-tile load kept live across the loop).
        x0 = x_ref[:, 0:1, :].astype(jnp.float32)                  # (nb, 1, t)
        z = [w_ref[co * c_in + 0] * x0 + b_ref[co] for co in range(c_out)]
        for ci in range(1, c_in):
            xc = x_ref[:, ci:ci + 1, :].astype(jnp.float32)
            for co in range(c_out):
                z[co] = z[co] + w_ref[co * c_in + ci] * xc

        if emit_logits:
            for co in range(c_out):
                logit_ref[:, co:co + 1, :] = z[co].astype(logit_ref.dtype)

        # softmax over the channel axis (F.softmax(..., dim=1)).
        if c_out == 2:
            # softmax over 2 channels == sigmoid(z0 - z1); no cross-sublane
            # max/sum, one exp, divide on the EUP. p0 + (1 - p0) == 1 exactly.
            p0 = pl.reciprocal(1.0 + jnp.exp(z[1] - z[0]), approx=True)
            prob_ref[:, 0:1, :] = p0.astype(prob_ref.dtype)
            prob_ref[:, 1:2, :] = (1.0 - p0).astype(prob_ref.dtype)
        else:
            m = z[0]
            for co in range(1, c_out):
                m = jnp.maximum(m, z[co])
            e = [jnp.exp(zc - m) for zc in z]
            denom = e[0]
            for ec in e[1:]:
                denom = denom + ec
            inv = pl.reciprocal(denom, approx=True)
            for co in range(c_out):
                prob_ref[:, co:co + 1, :] = (e[co] * inv).astype(prob_ref.dtype)

    return kernel


def boundary_head_fused(x_nchw, w, b, *, max_hw_tile=2048, max_n_block=8,
                        emit_logits=True):
    """Fused 1x1 conv (+bias) and channel softmax for an NCHW tensor.

    Returns (logits, softmax(logits, dim=1)) shaped (N, Cout, H, W); logits is
    None when emit_logits=False (cuts HBM writes ~in half for the loss-only path).
    """
    N, Cin, H, W = x_nchw.shape
    Cout = int(b.shape[0])
    HW = H * W

    x = x_nchw.reshape(N, Cin, HW)
    # Lane-dense layout: pad H*W to a 128-multiple so every store is unmasked.
    HW_pad = _round_up(HW, 128)
    if HW_pad != HW:
        x = jnp.pad(x, ((0, 0), (0, 0), (0, HW_pad - HW)))

    t = min(HW_pad, max_hw_tile)
    nb = min(N, max_n_block)
    n_out = 2 if emit_logits else 1

    # Double-buffered per-block VMEM (sublanes pad 4/2 -> 8, f32).
    def block_bytes(nb_, t_):
        return (1 + n_out) * 2 * nb_ * 8 * t_ * 4

    VMEM_BUDGET = 24 * 1024 * 1024        # fits v5e 16 MiB scoped w/ headroom raise
    while block_bytes(nb, t) > VMEM_BUDGET and (t > 128 or nb > 1):
        if t > 128:
            t = max(128, _round_up(t // 2, 128))
        else:
            nb = max(1, nb // 2)

    # Guarantee >= 2 'parallel' blocks where possible (v7x dual TensorCore).
    if pl.cdiv(N, nb) * pl.cdiv(HW_pad, t) < 2:
        if HW_pad >= 256:
            t = _round_up(pl.cdiv(HW_pad, 2), 128)
        elif nb > 1:
            nb = pl.cdiv(nb, 2)

    grid = (pl.cdiv(N, nb), pl.cdiv(HW_pad, t))

    out_shapes = []
    out_specs = []
    if emit_logits:
        out_shapes.append(jax.ShapeDtypeStruct((N, Cout, HW_pad), x.dtype))
        out_specs.append(pl.BlockSpec((nb, Cout, t), lambda n, h: (n, 0, h)))
    out_shapes.append(jax.ShapeDtypeStruct((N, Cout, HW_pad), x.dtype))
    out_specs.append(pl.BlockSpec((nb, Cout, t), lambda n, h: (n, 0, h)))

    vmem_limit = int(min(64 << 20, max(4 * block_bytes(nb, t), 32 << 20)))

    results = pl.pallas_call(
        _make_boundary_kernel(Cin, Cout, emit_logits),
        out_shape=tuple(out_shapes),
        grid_spec=pl.GridSpec(
            grid=grid,
            in_specs=[
                pl.BlockSpec(memory_space=pltpu.MemorySpace.SMEM),    # w (flat 1-D)
                pl.BlockSpec(memory_space=pltpu.MemorySpace.SMEM),    # b (1-D)
                pl.BlockSpec((nb, Cin, t), lambda n, h: (n, 0, h)),   # x
            ],
            out_specs=tuple(out_specs),
        ),
        compiler_params=pltpu.CompilerParams(
            dimension_semantics=("parallel", "parallel"),
            vmem_limit_bytes=vmem_limit),
    )(w.reshape(-1).astype(jnp.float32), b.astype(jnp.float32), x)

    results = results if isinstance(results, (tuple, list)) else (results,)

    def _unpad(a):
        if HW_pad != HW:
            a = a[:, :, :HW]
        return a.reshape(N, Cout, H, W)

    if emit_logits:
        return _unpad(results[0]), _unpad(results[1])
    return None, _unpad(results[0])


# ---------------------------------------------------------------------------
# Tiny losses / heads kept in plain JAX (a few dozen elements; a Pallas call's
# fixed dispatch cost would dominate)
# ---------------------------------------------------------------------------

def smooth_l1_mean(pred, targ):
    """torch.nn.functional.smooth_l1_loss (beta=1.0, reduction='mean')."""
    d = pred.astype(jnp.float32) - targ.astype(jnp.float32)
    ad = jnp.abs(d)
    per = jnp.where(ad < 1.0, 0.5 * d * d, ad - 0.5)
    return jnp.mean(per)


# ---------------------------------------------------------------------------
# Synthetic `net` (the wrapped network is not defined in the snippet)
# ---------------------------------------------------------------------------

def init_net_params(key, cin=4, cout=2, n_pts=8):
    k1, k2 = jax.random.split(key, 2)
    return {
        "w_conv": 0.1 * jax.random.normal(k1, (cout, cin), jnp.float32),
        "b_conv": jnp.zeros((cout,), jnp.float32),
        "w_py": 0.1 * jax.random.normal(k2, (cin, n_pts * 2), jnp.float32),
    }


def net_forward(params, inp, batch, *, emit_boundary_logits=True):
    # 'prob_map_boundary' head: 1x1 conv; its channel softmax (needed by the
    # wrapper's hybrid loss) is fused into the same Pallas kernel so the conv
    # output never round-trips through HBM before the softmax.  When logits
    # are not consumed downstream, emit_boundary_logits=False skips that write.
    prob_map, prob_map_softmax = boundary_head_fused(
        inp, params["w_conv"], params["b_conv"], emit_logits=emit_boundary_logits)
    # 'py_pred' head: global average pool + linear (tiny glue, plain JAX).
    pooled = jnp.mean(inp, axis=(2, 3))                       # (N, Cin)
    py = pooled @ params["w_py"]                              # (N, n_pts*2)
    py_pred = [py.reshape(inp.shape[0], -1, 2)]               # list of (N, P, 2)
    return {
        "prob_map_boundary": prob_map,
        "prob_map_boundary_softmax": prob_map_softmax,        # fused by-product
        "py_pred": py_pred,
        "i_gt_py": batch["i_gt_py"],
    }


# ---------------------------------------------------------------------------
# NetworkWrapper.forward
# ---------------------------------------------------------------------------

def network_wrapper_forward(params, batch, epoch, training=True,
                            emit_boundary_logits=True):
    output = net_forward(params, batch["inp"], batch,
                         emit_boundary_logits=emit_boundary_logits)
    scalar_stats = {}
    loss = jnp.float32(0.0)

    # F.softmax(output['prob_map_boundary'], dim=1): computed inside the fused
    # Pallas kernel (equivalent to the separate softmax call).
    prob = output["prob_map_boundary_softmax"]

    # TODO(synk): WeightedHausdorffDistanceDoubleBoundLoss source is not part of
    # the provided module; hybrid_loss/term1/term2 are zero placeholders (the
    # softmax it consumes is real).
    hybrid_loss = jnp.float32(0.0) * jnp.sum(prob[:, 0, 0, 0])
    term1 = jnp.float32(0.0)
    term2 = jnp.float32(0.0)
    scalar_stats.update({"hybrid_loss": hybrid_loss, "term1": term1, "term2": term2})
    loss = loss + hybrid_loss

    if not training:
        scalar_stats.update({"loss": loss})
        image_stats = {}
        return output, loss, scalar_stats, image_stats

    py_loss = jnp.float32(0.0)
    output["py_pred"] = [output["py_pred"][-1]]
    for i in range(len(output["py_pred"])):
        py_loss = py_loss + smooth_l1_mean(
            output["py_pred"][i], output["i_gt_py"]) / len(output["py_pred"])
    scalar_stats.update({"py_loss": py_loss})
    loss = loss + py_loss

    scalar_stats.update({"loss": loss})
    image_stats = {}
    return output, loss, scalar_stats, image_stats


# ---------------------------------------------------------------------------
# Main
# ---------------------------------------------------------------------------

if __name__ == "__main__":
    key = jax.random.PRNGKey(0)
    k_inp, k_mask, k_gt, k_params = jax.random.split(key, 4)

    N, Cin, H, W = 2, 4, 16, 16
    n_pts = 8

    batch = {
        "inp": jax.random.normal(k_inp, (N, Cin, H, W), jnp.float32),
        "mask": (jax.random.uniform(k_mask, (N, H, W)) > 0.5).astype(jnp.float32),
        "i_gt_py": jax.random.normal(k_gt, (N, n_pts, 2), jnp.float32),
    }
    params = init_net_params(k_params, cin=Cin, cout=2, n_pts=n_pts)

    # Full forward (keeps the original module's output dict, incl. raw logits).
    output, loss, scalar_stats, image_stats = network_wrapper_forward(
        params, batch, epoch=0, training=True)
    jax.block_until_ready(loss)
    jax.block_until_ready(output["prob_map_boundary"])
    jax.block_until_ready(output["prob_map_boundary_softmax"])

    # Reduced-traffic variant (softmax only, ~33% less HBM traffic) also compiles.
    _, probs_only = boundary_head_fused(
        batch["inp"], params["w_conv"], params["b_conv"], emit_logits=False)
    jax.block_until_ready(probs_only)

    # Sanity check against plain-JAX reference (loose tol for EUP approx recip).
    ref_logits = (jnp.einsum("oc,nchw->nohw", params["w_conv"], batch["inp"])
                  + params["b_conv"][None, :, None, None])
    ref_probs = jax.nn.softmax(ref_logits, axis=1)
    assert float(jnp.max(jnp.abs(output["prob_map_boundary"] - ref_logits))) < 1e-4
    assert float(jnp.max(jnp.abs(output["prob_map_boundary_softmax"] - ref_probs))) < 2e-2
    assert float(jnp.max(jnp.abs(probs_only - ref_probs))) < 2e-2

    print("KERNEL_OK")
</pallas_src>

<mosaic_0001>
module attributes {stable_mosaic.version = 11 : i64} {
  func.func @kernel(%arg0: i32, %arg1: i32, %arg2: memref<8xf32, #tpu.memory_space<smem>>, %arg3: memref<2xf32, #tpu.memory_space<smem>>, %arg4: memref<2x4x128xf32, #tpu.memory_space<vmem>>, %arg5: memref<2x2x128xf32, #tpu.memory_space<vmem>>, %arg6: memref<2x2x128xf32, #tpu.memory_space<vmem>>) attributes {dimension_semantics = [#tpu.dimension_semantics<parallel>, #tpu.dimension_semantics<parallel>], iteration_bounds = array<i64: 1, 2>, scalar_prefetch = 0 : i64, scratch_operands = 0 : i64, tpu.core_type = #tpu.core_type<tc>, window_params = [{transform_indices = @transform_0, window_bounds = array<i64: 8>}, {transform_indices = @transform_1, window_bounds = array<i64: 2>}, {transform_indices = @transform_2, window_bounds = array<i64: 2, 4, 128>}, {transform_indices = @transform_3, window_bounds = array<i64: 2, 2, 128>}, {transform_indices = @transform_4, window_bounds = array<i64: 2, 2, 128>}]} {
    %c0 = arith.constant 0 : index
    %c0_0 = arith.constant 0 : index
    %c0_1 = arith.constant 0 : index
    %0 = vector.load %arg4[%c0, %c0_0, %c0_1] : memref<2x4x128xf32, #tpu.memory_space<vmem>>, vector<2x1x128xf32>
    %c0_2 = arith.constant 0 : index
    %1 = memref.load %arg2[%c0_2] : memref<8xf32, #tpu.memory_space<smem>>
    %2 = vector.broadcast %1 : f32 to vector<2x1x128xf32>
    %3 = arith.mulf %2, %0 : vector<2x1x128xf32>
    %c0_3 = arith.constant 0 : index
    %4 = memref.load %arg3[%c0_3] : memref<2xf32, #tpu.memory_space<smem>>
    %5 = vector.broadcast %4 : f32 to vector<2x1x128xf32>
    %6 = arith.addf %3, %5 : vector<2x1x128xf32>
    %c4 = arith.constant 4 : index
    %7 = memref.load %arg2[%c4] : memref<8xf32, #tpu.memory_space<smem>>
    %8 = vector.broadcast %7 : f32 to vector<2x1x128xf32>
    %9 = arith.mulf %8, %0 : vector<2x1x128xf32>
    %c1 = arith.constant 1 : index
    %10 = memref.load %arg3[%c1] : memref<2xf32, #tpu.memory_space<smem>>
    %11 = vector.broadcast %10 : f32 to vector<2x1x128xf32>
    %12 = arith.addf %9, %11 : vector<2x1x128xf32>
    %c0_4 = arith.constant 0 : index
    %c1_5 = arith.constant 1 : index
    %c0_6 = arith.constant 0 : index
    %13 = vector.load %arg4[%c0_4, %c1_5, %c0_6] : memref<2x4x128xf32, #tpu.memory_space<vmem>>, vector<2x1x128xf32>
    %c1_7 = arith.constant 1 : index
    %14 = memref.load %arg2[%c1_7] : memref<8xf32, #tpu.memory_space<smem>>
    %15 = vector.broadcast %14 : f32 to vector<2x1x128xf32>
    %16 = arith.mulf %15, %13 : vector<2x1x128xf32>
    %17 = arith.addf %6, %16 : vector<2x1x128xf32>
    %c5 = arith.constant 5 : index
    %18 = memref.load %arg2[%c5] : memref<8xf32, #tpu.memory_space<smem>>
    %19 = vector.broadcast %18 : f32 to vector<2x1x128xf32>
    %20 = arith.mulf %19, %13 : vector<2x1x128xf32>
    %21 = arith.addf %12, %20 : vector<2x1x128xf32>
    %c0_8 = arith.constant 0 : index
    %c2 = arith.constant 2 : index
    %c0_9 = arith.constant 0 : index
    %22 = vector.load %arg4[%c0_8, %c2, %c0_9] : memref<2x4x128xf32, #tpu.memory_space<vmem>>, vector<2x1x128xf32>
    %c2_10 = arith.constant 2 : index
    %23 = memref.load %arg2[%c2_10] : memref<8xf32, #tpu.memory_space<smem>>
    %24 = vector.broadcast %23 : f32 to vector<2x1x128xf32>
    %25 = arith.mulf %24, %22 : vector<2x1x128xf32>
    %26 = arith.addf %17, %25 : vector<2x1x128xf32>
    %c6 = arith.constant 6 : index
    %27 = memref.load %arg2[%c6] : memref<8xf32, #tpu.memory_space<smem>>
    %28 = vector.broadcast %27 : f32 to vector<2x1x128xf32>
    %29 = arith.mulf %28, %22 : vector<2x1x128xf32>
    %30 = arith.addf %21, %29 : vector<2x1x128xf32>
    %c0_11 = arith.constant 0 : index
    %c3 = arith.constant 3 : index
    %c0_12 = arith.constant 0 : index
    %31 = vector.load %arg4[%c0_11, %c3, %c0_12] : memref<2x4x128xf32, #tpu.memory_space<vmem>>, vector<2x1x128xf32>
    %c3_13 = arith.constant 3 : index
    %32 = memref.load %arg2[%c3_13] : memref<8xf32, #tpu.memory_space<smem>>
    %33 = vector.broadcast %32 : f32 to vector<2x1x128xf32>
    %34 = arith.mulf %33, %31 : vector<2x1x128xf32>
    %35 = arith.addf %26, %34 : vector<2x1x128xf32>
    %c7 = arith.constant 7 : index
    %36 = memref.load %arg2[%c7] : memref<8xf32, #tpu.memory_space<smem>>
    %37 = vector.broadcast %36 : f32 to vector<2x1x128xf32>
    %38 = arith.mulf %37, %31 : vector<2x1x128xf32>
    %39 = arith.addf %30, %38 : vector<2x1x128xf32>
    %c0_14 = arith.constant 0 : index
    %c0_15 = arith.constant 0 : index
    %c0_16 = arith.constant 0 : index
    %40 = vector.load %arg5[%c0_14, %c0_15, %c0_16] : memref<2x2x128xf32, #tpu.memory_space<vmem>>, vector<2x1x128xf32>
    tpu.vector_store %arg5[%c0_14, %c0_15, %c0_16], %35 {strides = array<i32>} : memref<2x2x128xf32, #tpu.memory_space<vmem>>, vector<2x1x128xf32>,
    %c0_17 = arith.constant 0 : index
    %c1_18 = arith.constant 1 : index
    %c0_19 = arith.constant 0 : index
    %41 = vector.load %arg5[%c0_17, %c1_18, %c0_19] : memref<2x2x128xf32, #tpu.memory_space<vmem>>, vector<2x1x128xf32>
    tpu.vector_store %arg5[%c0_17, %c1_18, %c0_19], %39 {strides = array<i32>} : memref<2x2x128xf32, #tpu.memory_space<vmem>>, vector<2x1x128xf32>,
    %42 = arith.subf %39, %35 : vector<2x1x128xf32>
    %43 = math.exp %42 : vector<2x1x128xf32>
    %cst = arith.constant 1.000000e+00 : f32
    %44 = vector.broadcast %cst : f32 to vector<2x1x128xf32>
    %45 = arith.addf %44, %43 : vector<2x1x128xf32>
    %46 = tpu.reciprocal %45 {approx = true} : vector<2x1x128xf32> -> vector<2x1x128xf32>
    %c0_20 = arith.constant 0 : index
    %c0_21 = arith.constant 0 : index
    %c0_22 = arith.constant 0 : index
    %47 = vector.load %arg6[%c0_20, %c0_21, %c0_22] : memref<2x2x128xf32, #tpu.memory_space<vmem>>, vector<2x1x128xf32>
    tpu.vector_store %arg6[%c0_20, %c0_21, %c0_22], %46 {strides = array<i32>} : memref<2x2x128xf32, #tpu.memory_space<vmem>>, vector<2x1x128xf32>,
    %cst_23 = arith.constant 1.000000e+00 : f32
    %48 = vector.broadcast %cst_23 : f32 to vector<2x1x128xf32>
    %49 = arith.subf %48, %46 : vector<2x1x128xf32>
    %c0_24 = arith.constant 0 : index
    %c1_25 = arith.constant 1 : index
    %c0_26 = arith.constant 0 : index
    %50 = vector.load %arg6[%c0_24, %c1_25, %c0_26] : memref<2x2x128xf32, #tpu.memory_space<vmem>>, vector<2x1x128xf32>
    tpu.vector_store %arg6[%c0_24, %c1_25, %c0_26], %49 {strides = array<i32>} : memref<2x2x128xf32, #tpu.memory_space<vmem>>, vector<2x1x128xf32>,
    return
  }
  func.func @transform_0(%arg0: i32, %arg1: i32) -> i32 {
    %c0_i32 = arith.constant 0 : i32
    %c0_i32_0 = arith.constant 0 : i32
    return %c0_i32 : i32
  }
  func.func @transform_1(%arg0: i32, %arg1: i32) -> i32 {
    %c0_i32 = arith.constant 0 : i32
    %c0_i32_0 = arith.constant 0 : i32
    return %c0_i32 : i32
  }
  func.func @transform_2(%arg0: i32, %arg1: i32) -> (i32, i32, i32) {
    %c0_i32 = arith.constant 0 : i32
    %c0_i32_0 = arith.constant 0 : i32
    return %arg0, %c0_i32, %arg1 : i32, i32, i32
  }
  func.func @transform_3(%arg0: i32, %arg1: i32) -> (i32, i32, i32) {
    %c0_i32 = arith.constant 0 : i32
    %c0_i32_0 = arith.constant 0 : i32
    return %arg0, %c0_i32, %arg1 : i32, i32, i32
  }
  func.func @transform_4(%arg0: i32, %arg1: i32) -> (i32, i32, i32) {
    %c0_i32 = arith.constant 0 : i32
    %c0_i32_0 = arith.constant 0 : i32
    return %arg0, %c0_i32, %arg1 : i32, i32, i32
  }
}

</mosaic_0001>

<llo_original>
// kernel: tpu_custom_call.1
$region0: #{tpu_custom_call.1}
  #allocation0 [shape = 'u32[]', space=smem, size = 0x4, offset = 0x4, fixed_abs, tag = 'smem constant byte address 0x4 - core index']
  #allocation1 [shape = 'u32[144,128]{1,0:T(1,128)}', space=vmem, size = 0x12000, scoped, tag = 'internal scratch']
  %s0 = inlined_call_operand.hbm [shape: f32[8], index: 0, kind: input, shape index: {}]
  %s1 = inlined_call_operand.vmem [shape: f32[2], index: 1, kind: input, shape index: {}]
  %s2 = inlined_call_operand.hbm [shape: f32[2,4,256], index: 2, kind: input, shape index: {}]
  %s3 = inlined_call_operand.hbm [shape: f32[2,2,256], index: 3, kind: output, shape index: {0}]
  %s4 = inlined_call_operand.hbm [shape: f32[2,2,256], index: 4, kind: output, shape index: {1}]
  %5 = xla_tuple %s3, %s4
  %s6 = sld [smem:[#allocation0]]
  $region65: #{tpu_custom_call.1} parent=0
    _
  %s8 = ssub.s32 1, %s6
  %s9 = scalar_select 0, %s8, %s6
  $region1: #{tpu_custom_call.1} parent=0
    #allocation2 [shape = 'u8[512]{0}', space=smem, size = 0x200, scoped, tag = 'input window, operand 0, single buffered']
    #allocation3 [shape = 's32[2]{0}', space=sflag, size = 0x8, scoped, tag = 'scoped memory for tpu_custom_call.1']
    #allocation4 [shape = 's32[2]{0}', space=sflag, size = 0x8, scoped, tag = 'scoped memory for tpu_custom_call.1']
    #allocation5 [shape = 's32[2]{0}', space=sflag, size = 0x8, scoped, tag = 'scoped memory for tpu_custom_call.1']
    #allocation6 [shape = 's32[2]{0}', space=sflag, size = 0x8, scoped, tag = 'scoped memory for tpu_custom_call.1']
    #allocation7 [shape = 'u8[512]{0}', space=smem, size = 0x200, scoped, tag = 'input window, operand 1, single buffered']
    #allocation8 [shape = 'u8[8192]{0}', space=vmem, size = 0x2000, scoped, tag = 'input window, operand 2']
    #allocation9 [shape = 'u8[4096]{0}', space=vmem, size = 0x1000, scoped, tag = 'output window, operand 0']
    #allocation10 [shape = 'u8[4096]{0}', space=vmem, size = 0x1000, scoped, tag = 'output window, operand 1']
    #allocation11 [shape = 's32[2]{0}', space=sflag, size = 0x8, scoped, tag = 'scoped memory for tpu_custom_call.1']
    %10 = vsyncpa [#allocation5], 0
    %11 = vsyncpa [#allocation6], 0
    %12 = vsyncpa [#allocation3], 0
    %s13 = scalar_lea.sflag [#allocation3], 1
    %14 = vsyncpa %s13, 0
    %15 = vsyncpa [#allocation4], 0
    %s16 = scalar_lea.sflag [#allocation4], 1
    %17 = vsyncpa %s16, 0
    %18 = vsyncpa [#allocation11], 0
    %s19 = scalar_lea.sflag [#allocation11], 1
    %20 = vsyncpa %s19, 0
    loop: start=0, step=1, limit=4
    $region2: #{tpu_custom_call.1} parent=1 // loop_pre_header
      _
    $region3: #{tpu_custom_call.1} parent=1 // loop_header
      %s22 = sphi 0, %s26
      %p23 = scmp.ge.s32.totalorder %s22, 4
      %s29 = sphi 0, %s41
      %s30 = sphi 0, %s37
      %s31 = sphi 0, %s29
      %s32 = sphi 0, %s30
      %s33 = sphi 0, %s31
      %s34 = sphi 0, %s32
      %s42 = sphi 0, %s42
      %s44 = sphi 0, %s42
      %s45 = sphi 0, %s44
      %s59 = sphi 0, %s45
      %s63 = sphi 0, %s63
      %s65 = sphi 0, %s63
      %s66 = sphi 0, %s65
      %s80 = sphi 0, %s66
      %s88 = sphi 0, %s90
      %s91 = sphi 0, %s88
      %s92 = sphi 0, %s91
      %s108 = sphi 0, %s92
      %s116 = sphi 0, %s118
      %s119 = sphi 0, %s116
      %s120 = sphi 0, %s119
      %s136 = sphi 0, %s120
      %s144 = sphi 0, %s146
      %s147 = sphi 0, %s144
      %s148 = sphi 0, %s147
      %s164 = sphi 0, %s148
    $region4: #{tpu_custom_call.1} parent=1 // loop_header_branch
      %25 = sbr.rel (%p23) target = $region8
    $region5: #{tpu_custom_call.1} parent=1 // loop_body
      %s27 = ssub.s32 %s22, 1
      %s28 = ssub.s32 %s22, 2
      %s35 = sadd.s32 1, %s30
      %p36 = scmp.ge.s32.totalorder %s35, 2
      %s37 = scalar_select %p36, 0, %s35
      %s38 = sadd.s32 1, %s29
      %s39 = scalar_select %p36, %s38, %s29
      %p40 = scmp.ge.s32.totalorder %s39, 1
      %s41 = scalar_select %p40, 0, %s39
      %s43 = sadd.s32 %s42, 1
      %p46 = scmp.eq.s32.totalorder %s22, 1
      %p47 = scmp.ne.s32.totalorder %s42, %s44
      %p48 = scmp.eq.s32.totalorder %s22, 0
      %p49 = por %p47, %p48
      %p50 = scmp.ne.s32.totalorder %s42, %s44
      %p51 = scmp.eq.s32.totalorder %s27, 1
      %p52 = por %p50, %p51
      %p53 = scmp.ne.s32.totalorder %s44, %s45
      %p54 = scmp.eq.s32.totalorder %s27, 0
      %p55 = por %p53, %p54
      %p56 = scmp.ne.s32.totalorder %s44, %s45
      %p57 = scmp.eq.s32.totalorder %s28, 1
      %p58 = por %p56, %p57
      %p60 = scmp.ne.s32.totalorder %s45, %s59
      %p61 = scmp.eq.s32.totalorder %s28, 0
      %p62 = por %p60, %p61
      %s64 = sadd.s32 %s63, 1
      %p67 = scmp.eq.s32.totalorder %s22, 1
      %p68 = scmp.ne.s32.totalorder %s63, %s65
      %p69 = scmp.eq.s32.totalorder %s22, 0
      %p70 = por %p68, %p69
      %p71 = scmp.ne.s32.totalorder %s63, %s65
      %p72 = scmp.eq.s32.totalorder %s27, 1
      %p73 = por %p71, %p72
      %p74 = scmp.ne.s32.totalorder %s65, %s66
      %p75 = scmp.eq.s32.totalorder %s27, 0
      %p76 = por %p74, %p75
      %p77 = scmp.ne.s32.totalorder %s65, %s66
      %p78 = scmp.eq.s32.totalorder %s28, 1
      %p79 = por %p77, %p78
      %p81 = scmp.ne.s32.totalorder %s66, %s80
      %p82 = scmp.eq.s32.totalorder %s28, 0
      %p83 = por %p81, %p82
      %s84 = ssub.s32 %s29, %s41
      %s85 = ssub.s32 %s30, %s37
      %s86 = sor.u32 %s84, %s85
      %p87 = scmp.eq.s32.totalorder %s86, 0
      %s89 = sadd.s32 %s88, 1
      %s90 = scalar_select %p87, %s88, %s89
      %p93 = pneg %p87
      %p94 = scmp.eq.s32.totalorder %s22, 1
      %p95 = por %p93, %p94
      %p96 = scmp.ne.s32.totalorder %s88, %s91
      %p97 = scmp.eq.s32.totalorder %s22, 0
      %p98 = por %p96, %p97
      %p99 = scmp.ne.s32.totalorder %s88, %s91
      %p100 = scmp.eq.s32.totalorder %s27, 1
      %p101 = por %p99, %p100
      %p102 = scmp.ne.s32.totalorder %s91, %s92
      %p103 = scmp.eq.s32.totalorder %s27, 0
      %p104 = por %p102, %p103
      %p105 = scmp.ne.s32.totalorder %s91, %s92
      %p106 = scmp.eq.s32.totalorder %s28, 1
      %p107 = por %p105, %p106
      %p109 = scmp.ne.s32.totalorder %s92, %s108
      %p110 = scmp.eq.s32.totalorder %s28, 0
      %p111 = por %p109, %p110
      %s112 = ssub.s32 %s29, %s41
      %s113 = ssub.s32 %s30, %s37
      %s114 = sor.u32 %s112, %s113
      %p115 = scmp.eq.s32.totalorder %s114, 0
      %s117 = sadd.s32 %s116, 1
      %s118 = scalar_select %p115, %s116, %s117
      %p121 = pneg %p115
      %p122 = scmp.eq.s32.totalorder %s22, 1
      %p123 = por %p121, %p122
      %p124 = scmp.ne.s32.totalorder %s116, %s119
      %p125 = scmp.eq.s32.totalorder %s22, 0
      %p126 = por %p124, %p125
      %p127 = scmp.ne.s32.totalorder %s116, %s119
      %p128 = scmp.eq.s32.totalorder %s27, 1
      %p129 = por %p127, %p128
      %p130 = scmp.ne.s32.totalorder %s119, %s120
      %p131 = scmp.eq.s32.totalorder %s27, 0
      %p132 = por %p130, %p131
      %p133 = scmp.ne.s32.totalorder %s119, %s120
      %p134 = scmp.eq.s32.totalorder %s28, 1
      %p135 = por %p133, %p134
      %p137 = scmp.ne.s32.totalorder %s120, %s136
      %p138 = scmp.eq.s32.totalorder %s28, 0
      %p139 = por %p137, %p138
      %s140 = ssub.s32 %s29, %s41
      %s141 = ssub.s32 %s30, %s37
      %s142 = sor.u32 %s140, %s141
      %p143 = scmp.eq.s32.totalorder %s142, 0
      %s145 = sadd.s32 %s144, 1
      %s146 = scalar_select %p143, %s144, %s145
      %p149 = pneg %p143
      %p150 = scmp.eq.s32.totalorder %s22, 1
      %p151 = por %p149, %p150
      %p152 = scmp.ne.s32.totalorder %s144, %s147
      %p153 = scmp.eq.s32.totalorder %s22, 0
      %p154 = por %p152, %p153
      %p155 = scmp.ne.s32.totalorder %s144, %s147
      %p156 = scmp.eq.s32.totalorder %s27, 1
      %p157 = por %p155, %p156
      %p158 = scmp.ne.s32.totalorder %s147, %s148
      %p159 = scmp.eq.s32.totalorder %s27, 0
      %p160 = por %p158, %p159
      %p161 = scmp.ne.s32.totalorder %s147, %s148
      %p162 = scmp.eq.s32.totalorder %s28, 1
      %p163 = por %p161, %p162
      %p165 = scmp.ne.s32.totalorder %s148, %s164
      %p166 = scmp.eq.s32.totalorder %s28, 0
      %p167 = por %p165, %p166
      %p168 = scmp.le.s32.totalorder 1, %s22
      %p169 = scmp.lt.s32.totalorder %s22, 3
      %p170 = pnand %p168, %p169
      %p171 = pneg %p170
      // Predicated region
      $region9: #{tpu_custom_call.1} parent=5 // pred_check
        _
      $region10: #{tpu_custom_call.1} parent=5 // pred_check_branch
        %173 = sbr.rel (%p170) target = $region12
      $region11: #{tpu_custom_call.1} parent=5 // pred_region
        %s174 = ssub.s32 %s22, 1
        // Predicated region
        $region13: #{tpu_custom_call.1} parent=11 // pred_check
          %p175 = pneg %p55
        $region14: #{tpu_custom_call.1} parent=11 // pred_check_branch
          %177 = sbr.rel (%p175) target = $region16
        $region15: #{tpu_custom_call.1} parent=11 // pred_region
          %s179 = ssub.s32 16, 16
          %180 = vsyncadd [#allocation5], %s179
          %183 = dma.hbm_to_smem %s0, 16, [#allocation2], [#allocation5]
        $region16: #{tpu_custom_call.1} parent=11 // pred_fallthru
          _
        // Predicated region
        $region17: #{tpu_custom_call.1} parent=11 // pred_check
          %p184 = pneg %p76
        $region18: #{tpu_custom_call.1} parent=11 // pred_check_branch
          %186 = sbr.rel (%p184) target = $region20
        $region19: #{tpu_custom_call.1} parent=11 // pred_region
          %s188 = ssub.s32 16, 16
          %189 = vsyncadd [#allocation6], %s188
          %s191 = sshll.u32 %s1, 4
          %s192 = int_to_ptr.vmem [resolvable:$true] %s191
          %194 = dma.vmem_to_smem %s192, 16, [#allocation7], [#allocation6]
        $region20: #{tpu_custom_call.1} parent=11 // pred_fallthru
          _
      $region12: #{tpu_custom_call.1} parent=5 // pred_fallthru
        _
      %p195 = scmp.lt.s32.totalorder %s22, 2
      // Predicated region
      $region21: #{tpu_custom_call.1} parent=5 // pred_check
        %p196 = pneg %p195
      $region22: #{tpu_custom_call.1} parent=5 // pred_check_branch
        %198 = sbr.rel (%p196) target = $region24
      $region23: #{tpu_custom_call.1} parent=5 // pred_region
        // Predicated region
        $region25: #{tpu_custom_call.1} parent=23 // pred_check
          %p199 = pneg %p98
        $region26: #{tpu_custom_call.1} parent=23 // pred_check_branch
          %201 = sbr.rel (%p199) target = $region28
        $region27: #{tpu_custom_call.1} parent=23 // pred_region
          %s202 = sand.u32 %s88, 1
          %s203 = scalar_lea.sflag [#allocation3], %s202
          %s204 = sand.u32 %s88, 1
          %s205 = smul.addr %s204, 8
          %s206 = scalar_lea.vmem [#allocation8], %s205
          %s207 = smul.u32 2, %s29
          %s209 = ssub.s32 128, 128
          %210 = vsyncadd %s203, %s209
          %s211 = smul.addr %s207, 2
          %s212 = sadd.s32 %s30, %s211
          %s213 = smul.addr %s212, 64
          %s214 = scalar_lea.hbm %s2, %s213
          %s215 = sshll.u32 %s206, 4
          %s216 = int_to_ptr.vmem [resolvable:$true] %s215
          %221 = dma.hbm_to_vmem [thread:$0]  %s214, 128, %s216, %s203, 128, 64, 4
        $region28: #{tpu_custom_call.1} parent=23 // pred_fallthru
          _
      $region24: #{tpu_custom_call.1} parent=5 // pred_fallthru
        _
      %p222 = scmp.le.s32.totalorder 1, %s22
      %p223 = scmp.lt.s32.totalorder %s22, 3
      %p224 = pnand %p222, %p223
      %p225 = pneg %p224
      // Predicated region
      $region29: #{tpu_custom_call.1} parent=5 // pred_check
        _
      $region30: #{tpu_custom_call.1} parent=5 // pred_check_branch
        %227 = sbr.rel (%p224) target = $region32
      $region31: #{tpu_custom_call.1} parent=5 // pred_region
        %s228 = ssub.s32 %s22, 1
        // Predicated region
        $region33: #{tpu_custom_call.1} parent=31 // pred_check
          %p229 = pneg %p55
        $region34: #{tpu_custom_call.1} parent=31 // pred_check_branch
          %231 = sbr.rel (%p229) target = $region36
        $region35: #{tpu_custom_call.1} parent=31 // pred_region
          %232 = dma.done [#allocation5], 16
        $region36: #{tpu_custom_call.1} parent=31 // pred_fallthru
          _
        // Predicated region
        $region37: #{tpu_custom_call.1} parent=31 // pred_check
          %p233 = pneg %p76
        $region38: #{tpu_custom_call.1} parent=31 // pred_check_branch
          %235 = sbr.rel (%p233) target = $region40
        $region39: #{tpu_custom_call.1} parent=31 // pred_region
          %236 = dma.done [#allocation6], 16
        $region40: #{tpu_custom_call.1} parent=31 // pred_fallthru
          _
        %s237 = sand.u32 %s91, 1
        %s238 = scalar_lea.sflag [#allocation3], %s237
        %s239 = sand.u32 %s91, 1
        %s240 = smul.addr %s239, 8
        %s241 = scalar_lea.vmem [#allocation8], %s240
        // Predicated region
        $region41: #{tpu_custom_call.1} parent=31 // pred_check
          %p242 = pneg %p104
        $region42: #{tpu_custom_call.1} parent=31 // pred_check_branch
          %244 = sbr.rel (%p242) target = $region44
        $region43: #{tpu_custom_call.1} parent=31 // pred_region
          %245 = dma.done %s238, 128
        $region44: #{tpu_custom_call.1} parent=31 // pred_fallthru
          _
        %246 = sfence
        %p247 = pneg %p55
        %p248 = pneg %p52
        %p249 = pneg %p76
        %p250 = pneg %p73
        %s251 = sand.u32 %s91, 1
        %s252 = scalar_lea.sflag [#allocation3], %s251
        %s253 = sand.u32 %s91, 1
        %s254 = smul.addr %s253, 8
        %s255 = scalar_lea.vmem [#allocation8], %s254
        %p256 = pneg %p104
        %p257 = pneg %p101
        %p258 = pneg %p132
        %p259 = pneg %p129
        %s260 = sand.u32 %s119, 1
        %s261 = scalar_lea.sflag [#allocation4], %s260
        %s262 = sand.u32 %s119, 1
        %s263 = smul.addr %s262, 4
        %s264 = scalar_lea.vmem [#allocation9], %s263
        %p265 = pneg %p160
        %p266 = pneg %p157
        %s267 = sand.u32 %s147, 1
        %s268 = scalar_lea.sflag [#allocation11], %s267
        %s269 = sand.u32 %s147, 1
        %s270 = smul.addr %s269, 4
        %s271 = scalar_lea.vmem [#allocation10], %s270
        %s272 = smul.u32 2, %s31
        %s273 = smul.u32 2, %s31
        %s274 = smul.u32 2, %s31
        %v275 = vld [vmem:[%s241] sm:$0x1]
        %v276 = vld [vmem:[%s241 + $0x4] sm:$0x1]
        %s277 = sld [smem:[#allocation2]]
        %v278 = vstv %s277
        %v279 = vmul.f32 %v278, %v275
        %v280 = vmul.f32 %v278, %v276
        %s281 = sld [smem:[#allocation7]]
        %v282 = vstv %s281
        %v283 = vadd.f32 %v279, %v282
        %v284 = vadd.f32 %v280, %v282
        %s285 = sld [smem:[#allocation2 + $0x4]]
        %v286 = vstv %s285
        %v287 = vmul.f32 %v286, %v275
        %v288 = vmul.f32 %v286, %v276
        %s289 = sld [smem:[#allocation7 + $0x1]]
        %v290 = vstv %s289
        %v291 = vadd.f32 %v287, %v290
        %v292 = vadd.f32 %v288, %v290
        %v293 = vld [vmem:[%s241 + $0x1] sm:$0x1]
        %v294 = vld [vmem:[%s241 + $0x5] sm:$0x1]
        %s295 = sld [smem:[#allocation2 + $0x1]]
        %v296 = vstv %s295
        %v297 = vmul.f32 %v296, %v293
        %v298 = vmul.f32 %v296, %v294
        %v299 = vadd.f32 %v283, %v297
        %v300 = vadd.f32 %v284, %v298
        %s301 = sld [smem:[#allocation2 + $0x5]]
        %v302 = vstv %s301
        %v303 = vmul.f32 %v302, %v293
        %v304 = vmul.f32 %v302, %v294
        %v305 = vadd.f32 %v291, %v303
        %v306 = vadd.f32 %v292, %v304
        %v307 = vld [vmem:[%s241 + $0x2] sm:$0x1]
        %v308 = vld [vmem:[%s241 + $0x6] sm:$0x1]
        %s309 = sld [smem:[#allocation2 + $0x2]]
        %v310 = vstv %s309
        %v311 = vmul.f32 %v310, %v307
        %v312 = vmul.f32 %v310, %v308
        %v313 = vadd.f32 %v299, %v311
        %v314 = vadd.f32 %v300, %v312
        %s315 = sld [smem:[#allocation2 + $0x6]]
        %v316 = vstv %s315
        %v317 = vmul.f32 %v316, %v307
        %v318 = vmul.f32 %v316, %v308
        %v319 = vadd.f32 %v305, %v317
        %v320 = vadd.f32 %v306, %v318
        %v321 = vld [vmem:[%s241 + $0x3] sm:$0x1]
        %v322 = vld [vmem:[%s241 + $0x7] sm:$0x1]
        %s323 = sld [smem:[#allocation2 + $0x3]]
        %v324 = vstv %s323
        %v325 = vmul.f32 %v324, %v321
        %v326 = vmul.f32 %v324, %v322
        %v327 = vadd.f32 %v313, %v325
        %v328 = vadd.f32 %v314, %v326
        %s329 = sld [smem:[#allocation2 + $0x7]]
        %v330 = vstv %s329
        %v331 = vmul.f32 %v330, %v321
        %v332 = vmul.f32 %v330, %v322
        %v333 = vadd.f32 %v319, %v331
        %v334 = vadd.f32 %v320, %v332
        %335 = vst [vmem:[%s264] sm:$0x1] %v327
        %336 = vst [vmem:[%s264 + $0x2] sm:$0x1] %v328
        %337 = vst [vmem:[%s264 + $0x1] sm:$0x1] %v333
        %338 = vst [vmem:[%s264 + $0x3] sm:$0x1] %v334
        %v339 = vsub.f32 %v333, %v327
        %v340 = vsub.f32 %v334, %v328
        %v341 = vmul.f32 %v339, 1.442695
        %v342 = vpow.pop %v341
        %v343 = vmul.f32 %v340, 1.442695
        %v344 = vpow.pop %v343
        %v345 = vadd.f32 %v342, 1.0
        %v346 = vadd.f32 %v344, 1.0
        %v347 = vrcp.pop %v345
        %v348 = vrcp.pop %v346
        %349 = vst [vmem:[%s271] sm:$0x1] %v347
        %350 = vst [vmem:[%s271 + $0x2] sm:$0x1] %v348
        %v351 = vsub.f32 1.0, %v347
        %v352 = vsub.f32 1.0, %v348
        %353 = vst [vmem:[%s271 + $0x1] sm:$0x1] %v351
        %354 = vst [vmem:[%s271 + $0x3] sm:$0x1] %v352
        %s355 = sand.u32 %s119, 1
        %s356 = scalar_lea.sflag [#allocation4], %s355
        %s357 = sand.u32 %s119, 1
        %s358 = smul.addr %s357, 4
        %s359 = scalar_lea.vmem [#allocation9], %s358
        %s360 = sand.u32 %s147, 1
        %s361 = scalar_lea.sflag [#allocation11], %s360
        %s362 = sand.u32 %s147, 1
        %s363 = smul.addr %s362, 4
        %s364 = scalar_lea.vmem [#allocation10], %s363
        // Predicated region
        $region45: #{tpu_custom_call.1} parent=31 // pred_check
          %p365 = pneg %p129
        $region46: #{tpu_custom_call.1} parent=31 // pred_check_branch
          %367 = sbr.rel (%p365) target = $region48
        $region47: #{tpu_custom_call.1} parent=31 // pred_region
          %s368 = smul.u32 2, %s31
          %s370 = ssub.s32 64, 64
          %371 = vsyncadd %s356, %s370
          %s372 = smul.addr %s368, 2
          %s373 = sadd.s32 %s32, %s372
          %s374 = smul.addr %s373, 32
          %s375 = scalar_lea.hbm %s3, %s374
          %s376 = sshll.u32 %s359, 4
          %s377 = int_to_ptr.vmem [resolvable:$true] %s376
          %382 = dma.vmem_to_hbm [thread:$0]  %s377, 64, %s375, %s356, 32, 64, 2
        $region48: #{tpu_custom_call.1} parent=31 // pred_fallthru
          _
        // Predicated region
        $region49: #{tpu_custom_call.1} parent=31 // pred_check
          %p383 = pneg %p157
        $region50: #{tpu_custom_call.1} parent=31 // pred_check_branch
          %385 = sbr.rel (%p383) target = $region52
        $region51: #{tpu_custom_call.1} parent=31 // pred_region
          %s386 = smul.u32 2, %s31
          %s388 = ssub.s32 64, 64
          %389 = vsyncadd %s361, %s388
          %s390 = smul.addr %s386, 2
          %s391 = sadd.s32 %s32, %s390
          %s392 = smul.addr %s391, 32
          %s393 = scalar_lea.hbm %s4, %s392
          %s394 = sshll.u32 %s364, 4
          %s395 = int_to_ptr.vmem [resolvable:$true] %s394
          %400 = dma.vmem_to_hbm [thread:$0]  %s395, 64, %s393, %s361, 32, 64, 2
        $region52: #{tpu_custom_call.1} parent=31 // pred_fallthru
          _
      $region32: #{tpu_custom_call.1} parent=5 // pred_fallthru
        _
      %p401 = scmp.le.s32.totalorder 2, %s22
      // Predicated region
      $region53: #{tpu_custom_call.1} parent=5 // pred_check
        %p402 = pneg %p401
      $region54: #{tpu_custom_call.1} parent=5 // pred_check_branch
        %404 = sbr.rel (%p402) target = $region56
      $region55: #{tpu_custom_call.1} parent=5 // pred_region
        %s405 = ssub.s32 %s22, 2
        // Predicated region
        $region57: #{tpu_custom_call.1} parent=55 // pred_check
          %p406 = pneg %p135
        $region58: #{tpu_custom_call.1} parent=55 // pred_check_branch
          %408 = sbr.rel (%p406) target = $region60
        $region59: #{tpu_custom_call.1} parent=55 // pred_region
          %s409 = sand.u32 %s120, 1
          %s410 = scalar_lea.sflag [#allocation4], %s409
          %s411 = sand.u32 %s120, 1
          %s412 = smul.addr %s411, 4
          %s413 = scalar_lea.vmem [#allocation9], %s412
          %414 = dma.done %s410, 64
        $region60: #{tpu_custom_call.1} parent=55 // pred_fallthru
          _
        // Predicated region
        $region61: #{tpu_custom_call.1} parent=55 // pred_check
          %p415 = pneg %p163
        $region62: #{tpu_custom_call.1} parent=55 // pred_check_branch
          %417 = sbr.rel (%p415) target = $region64
        $region63: #{tpu_custom_call.1} parent=55 // pred_region
          %s418 = sand.u32 %s148, 1
          %s419 = scalar_lea.sflag [#allocation11], %s418
          %s420 = sand.u32 %s148, 1
          %s421 = smul.addr %s420, 4
          %s422 = scalar_lea.vmem [#allocation10], %s421
          %423 = dma.done %s419, 64
        $region64: #{tpu_custom_call.1} parent=55 // pred_fallthru
          _
      $region56: #{tpu_custom_call.1} parent=5 // pred_fallthru
        _
    $region6: #{tpu_custom_call.1} parent=1 // loop_footer
      %s26 = sadd.s32 1, %s22
    $region7: #{tpu_custom_call.1} parent=1 // loop_footer_branch
      %21 = sbr.rel target = $region3
    $region8: #{tpu_custom_call.1} parent=1 // loop_exit
      _
    %424 = vsyncpa [#allocation3], 1
    %s425 = scalar_lea.sflag [#allocation3], 1
    %426 = vsyncpa %s425, 1
    %427 = vsyncpa [#allocation4], 1
    %s428 = scalar_lea.sflag [#allocation4], 1
    %429 = vsyncpa %s428, 1
    %430 = vsyncpa [#allocation11], 1
    %s431 = scalar_lea.sflag [#allocation11], 1
    %432 = vsyncpa %s431, 1
    %433 = vsyncpa [#allocation5], 1
    %s434 = scalar_lea.sflag [#allocation5], 1
    %435 = vsyncpa %s434, 1
    %436 = vsyncpa [#allocation6], 1
    %s437 = scalar_lea.sflag [#allocation6], 1
    %438 = vsyncpa %s437, 1

</llo_original>
